<compile_context>
chip_gen: v6e
topology: v6e:2x2x1
jax: 0.10.0
libtpu: 0.0.40
codegen_flags: <defaults>
</compile_context>

<pallas_src>
import jax
import jax.numpy as jnp
from jax.experimental import pallas as pl
from jax.experimental.pallas import tpu as pltpu


def _mca_kernel(x_ref, sh_ref, sw_ref, eh_ref, ew_ref,
                ah0_ref, ah1_ref, aw0_ref, aw1_ref, o_ref):
    """One batch tile of MCAlayer_g (no_spatial=True), lane-dense layout.

    x_ref  : VMEM (TB, C, HW)  input tile (f32/bf16; upcast to f32 inline)
    sh_ref : VMEM (HW, H) f32  0/1 segment-sum matrix: lane h*W+w -> h
    sw_ref : VMEM (HW, W) f32  0/1 segment-sum matrix: lane h*W+w -> w
    eh_ref : VMEM (H, HW) f32  expansion (sh^T): gate_h -> per-lane
    ew_ref : VMEM (W, HW) f32  expansion (sw^T): gate_w -> per-lane
    ah0/ah1: VMEM (H, H)  f32  (0.5+sig(w0_h)) * A_h^T  /  (0.5+sig(w1_h)) * A_h^T  (k=3 conv)
    aw0/aw1: VMEM (W, W)  f32  same for the w gate
    o_ref  : VMEM (TB, C, HW)  output tile (same dtype as input)
    """
    _, C, HW = x_ref.shape
    H = ah0_ref.shape[0]
    W = aw0_ref.shape[0]
    n_h = C * W          # h gate: stats per h over (c, w)
    n_w = C * H          # w gate: stats per w over (c, h)
    n_all = C * HW

    # ---- pass 1: channel sums (short-lived f32 upcast, not kept live) ----
    xr = jnp.sum(x_ref[...].astype(jnp.float32), axis=1)                      # (TB, HW)
    sum_h = jnp.dot(xr, sh_ref[...], preferred_element_type=jnp.float32)      # (TB, H)
    sum_w = jnp.dot(xr, sw_ref[...], preferred_element_type=jnp.float32)      # (TB, W)
    mean_h = sum_h * (1.0 / n_h)
    mean_w = sum_w * (1.0 / n_w)
    # per-batch shift for numerically robust single-pass variance
    m_b = jnp.sum(xr, axis=1, keepdims=True) * (1.0 / n_all)                  # (TB, 1)

    # ---- pass 2: shifted sum of squares, shared between both gates ----
    d = x_ref[...].astype(jnp.float32) - m_b[:, :, None]                      # (TB, C, HW)
    x2s = jnp.sum(d * d, axis=1)                                              # (TB, HW)
    ssq_h = jnp.dot(x2s, sh_ref[...], preferred_element_type=jnp.float32)     # (TB, H)
    ssq_w = jnp.dot(x2s, sw_ref[...], preferred_element_type=jnp.float32)     # (TB, W)

    dh = mean_h - m_b
    dw = mean_w - m_b
    var_h = jnp.maximum(ssq_h - n_h * dh * dh, 0.0) * (1.0 / (n_h - 1))
    var_w = jnp.maximum(ssq_w - n_w * dw * dw, 0.0) * (1.0 / (n_w - 1))
    std_h = jnp.sqrt(var_h)          # unbiased (ddof=1), torch.std default
    std_w = jnp.sqrt(var_w)

    # k=3 zero-padded conv + learnable scalars folded into the (scaled) banded matrices.
    gate_h = jax.nn.sigmoid(
        jnp.dot(mean_h, ah0_ref[...], preferred_element_type=jnp.float32)
        + jnp.dot(std_h, ah1_ref[...], preferred_element_type=jnp.float32))   # (TB, H)
    gate_w = jax.nn.sigmoid(
        jnp.dot(mean_w, aw0_ref[...], preferred_element_type=jnp.float32)
        + jnp.dot(std_w, aw1_ref[...], preferred_element_type=jnp.float32))   # (TB, W)

    # Expand both gates back to lane-dense (TB, HW) and fold the final 0.5.
    g = 0.5 * (jnp.dot(gate_h, eh_ref[...], preferred_element_type=jnp.float32)
               + jnp.dot(gate_w, ew_ref[...], preferred_element_type=jnp.float32))  # (TB, HW)

    # ---- pass 3: epilogue — re-read the tile, multiply, downcast, store ----
    o_ref[...] = (x_ref[...].astype(jnp.float32) * g[:, None, :]).astype(o_ref.dtype)


def _conv1d_k3_matrix_T(taps, n):
    """A^T for out[i] = taps[0]*in[i-1] + taps[1]*in[i] + taps[2]*in[i+1] (zero pad),
    so conv(v) = v_row @ A^T inside the kernel (host-side parameter glue)."""
    taps = jnp.asarray(taps, dtype=jnp.float32)
    A = (taps[1] * jnp.eye(n, dtype=jnp.float32)
         + taps[0] * jnp.eye(n, k=-1, dtype=jnp.float32)
         + taps[2] * jnp.eye(n, k=1, dtype=jnp.float32))
    return A.T


def mca_layer_g(x, params):
    B, C, H, W = x.shape
    HW = H * W
    if C * W <= 1 or C * H <= 1:
        raise ValueError("ddof=1 std needs more than one element per gate")
    itemsize = jnp.dtype(x.dtype).itemsize

    # ---- host-side constant folding ----
    wh = jax.nn.sigmoid(jnp.asarray(params["h_cw_weight"], jnp.float32))
    ww = jax.nn.sigmoid(jnp.asarray(params["w_hc_weight"], jnp.float32))
    ahT = _conv1d_k3_matrix_T(params["h_cw_conv"], H)          # (H, H)
    awT = _conv1d_k3_matrix_T(params["w_hc_conv"], W)          # (W, W)
    ah0 = (0.5 + wh[0]) * ahT
    ah1 = (0.5 + wh[1]) * ahT
    aw0 = (0.5 + ww[0]) * awT
    aw1 = (0.5 + ww[1]) * awT

    sh = jnp.repeat(jnp.eye(H, dtype=jnp.float32), W, axis=0)  # (HW, H): lane h*W+w -> h
    sw = jnp.tile(jnp.eye(W, dtype=jnp.float32), (H, 1))       # (HW, W): lane h*W+w -> w
    eh = sh.T                                                  # (H, HW)
    ew = sw.T                                                  # (W, HW)

    # ---- derive block size & VMEM budget (sized to v7x's 64 MiB; generous on v5e/v6e) ----
    def vmem_need(tb):
        blk = tb * C * HW
        need = 2 * blk * itemsize                     # input block, double-buffered
        need += 2 * blk * itemsize                    # output block, double-buffered
        need += 2 * blk * 4                           # transient full-tile f32 values
        need += 2 * 4 * (2 * HW * H + 2 * HW * W + 2 * H * H + 2 * W * W)  # const operands
        need += 4 * tb * (8 * HW + 16 * (H + W))      # xr/x2s/g/stats (generous)
        return need

    V7X_SAFE = 48 * 2**20
    TARGET_BLOCK = 4 * 2**20
    tb = 0
    for d in range(1, B + 1):
        if B % d:
            continue
        if vmem_need(d) > V7X_SAFE:
            continue
        if d > 1 and d * C * HW * itemsize > TARGET_BLOCK:
            continue
        tb = d
    if tb == 0:
        # TODO(synk): in-kernel spatial tiling / reshape-based segmented reductions for huge H*W.
        raise ValueError("single-batch block exceeds the v7x-safe VMEM budget "
                         f"({vmem_need(1)} bytes > {V7X_SAFE})")
    nb = B // tb
    vmem_limit = int(min(96 * 2**20, max(vmem_need(tb) + 8 * 2**20, 32 * 2**20)))

    x3 = x.reshape(B, C, HW)   # lane-dense minor dim (free metadata reshape outside the kernel)

    grid_spec = pltpu.PrefetchScalarGridSpec(
        num_scalar_prefetch=0,
        grid=(nb,),
        in_specs=[
            pl.BlockSpec((tb, C, HW), lambda b: (b, 0, 0)),   # x: TB batch rows per step
            pl.BlockSpec((HW, H), lambda b: (0, 0)),          # constants: copied once
            pl.BlockSpec((HW, W), lambda b: (0, 0)),
            pl.BlockSpec((H, HW), lambda b: (0, 0)),
            pl.BlockSpec((W, HW), lambda b: (0, 0)),
            pl.BlockSpec((H, H), lambda b: (0, 0)),
            pl.BlockSpec((H, H), lambda b: (0, 0)),
            pl.BlockSpec((W, W), lambda b: (0, 0)),
            pl.BlockSpec((W, W), lambda b: (0, 0)),
        ],
        out_specs=pl.BlockSpec((tb, C, HW), lambda b: (b, 0, 0)),
    )

    out = pl.pallas_call(
        _mca_kernel,
        out_shape=jax.ShapeDtypeStruct((B, C, HW), x.dtype),
        grid_spec=grid_spec,
        compiler_params=pltpu.CompilerParams(
            dimension_semantics=("parallel",),      # shard batch grid across cores
            vmem_limit_bytes=vmem_limit,            # derived above, not a blind constant
        ),
    )(x3, sh, sw, eh, ew, ah0, ah1, aw0, aw1)
    return out.reshape(B, C, H, W)


# ----------------------- pure-JAX reference (for verification) -----------------------
def _ref_gate(y, weight2, taps):
    b, c, _, _ = y.shape
    flat = y.reshape(b, c, -1)
    avg = jnp.mean(flat, axis=2)
    std = jnp.std(flat, axis=2, ddof=1)
    ws = jax.nn.sigmoid(weight2)
    out = 0.5 * (avg + std) + ws[0] * avg + ws[1] * std          # (b, c)
    pad = jnp.pad(out, ((0, 0), (1, 1)))
    conv = taps[0] * pad[:, :c] + taps[1] * pad[:, 1:c + 1] + taps[2] * pad[:, 2:c + 2]
    g = jax.nn.sigmoid(conv)
    return y * g[:, :, None, None]


def ref_mca_layer_g(x, params):
    x_h = jnp.transpose(x, (0, 2, 1, 3))
    x_h = _ref_gate(x_h, params["h_cw_weight"], params["h_cw_conv"])
    x_h = jnp.transpose(x_h, (0, 2, 1, 3))
    x_w = jnp.transpose(x, (0, 3, 2, 1))
    x_w = _ref_gate(x_w, params["w_hc_weight"], params["w_hc_conv"])
    x_w = jnp.transpose(x_w, (0, 3, 2, 1))
    return 0.5 * (x_h + x_w)


if __name__ == "__main__":
    key = jax.random.PRNGKey(0)
    kx, k1, k2, k3, k4 = jax.random.split(key, 5)

    B, C, H, W = 2, 4, 16, 16
    x = jax.random.normal(kx, (B, C, H, W), dtype=jnp.float32)

    # MCAGate params: weight ~ rand(2); conv weight (1,1,1,3) -> 3 taps, no bias.
    params = {
        "h_cw_weight": jax.random.uniform(k1, (2,), dtype=jnp.float32),
        "h_cw_conv":   jax.random.normal(k2, (3,), dtype=jnp.float32) * 0.5,
        "w_hc_weight": jax.random.uniform(k3, (2,), dtype=jnp.float32),
        "w_hc_conv":   jax.random.normal(k4, (3,), dtype=jnp.float32) * 0.5,
    }

    out = mca_layer_g(x, params)
    out = jax.block_until_ready(out)

    ref = ref_mca_layer_g(x, params)
    assert out.shape == (B, C, H, W)
    assert jnp.allclose(out, ref, rtol=1e-4, atol=1e-4), "mismatch vs JAX reference"

    print("KERNEL_OK")
</pallas_src>

<mosaic_0001>
module attributes {stable_mosaic.version = 11 : i64} {
  func.func @_mca_kernel(%arg0: i32, %arg1: memref<2x4x256xf32, #tpu.memory_space<vmem>>, %arg2: memref<256x16xf32, #tpu.memory_space<vmem>>, %arg3: memref<256x16xf32, #tpu.memory_space<vmem>>, %arg4: memref<16x256xf32, #tpu.memory_space<vmem>>, %arg5: memref<16x256xf32, #tpu.memory_space<vmem>>, %arg6: memref<16x16xf32, #tpu.memory_space<vmem>>, %arg7: memref<16x16xf32, #tpu.memory_space<vmem>>, %arg8: memref<16x16xf32, #tpu.memory_space<vmem>>, %arg9: memref<16x16xf32, #tpu.memory_space<vmem>>, %arg10: memref<2x4x256xf32, #tpu.memory_space<vmem>>) attributes {dimension_semantics = [#tpu.dimension_semantics<parallel>], iteration_bounds = array<i64: 1>, scalar_prefetch = 0 : i64, scratch_operands = 0 : i64, tpu.core_type = #tpu.core_type<tc>, window_params = [{transform_indices = @transform_0, window_bounds = array<i64: 2, 4, 256>}, {pipeline_mode = #tpu.pipeline_mode<synchronous>, transform_indices = @transform_1, window_bounds = array<i64: 256, 16>}, {pipeline_mode = #tpu.pipeline_mode<synchronous>, transform_indices = @transform_2, window_bounds = array<i64: 256, 16>}, {pipeline_mode = #tpu.pipeline_mode<synchronous>, transform_indices = @transform_3, window_bounds = array<i64: 16, 256>}, {pipeline_mode = #tpu.pipeline_mode<synchronous>, transform_indices = @transform_4, window_bounds = array<i64: 16, 256>}, {pipeline_mode = #tpu.pipeline_mode<synchronous>, transform_indices = @transform_5, window_bounds = array<i64: 16, 16>}, {pipeline_mode = #tpu.pipeline_mode<synchronous>, transform_indices = @transform_6, window_bounds = array<i64: 16, 16>}, {pipeline_mode = #tpu.pipeline_mode<synchronous>, transform_indices = @transform_7, window_bounds = array<i64: 16, 16>}, {pipeline_mode = #tpu.pipeline_mode<synchronous>, transform_indices = @transform_8, window_bounds = array<i64: 16, 16>}, {transform_indices = @transform_9, window_bounds = array<i64: 2, 4, 256>}]} {
    %c0 = arith.constant 0 : index
    %c0_0 = arith.constant 0 : index
    %c0_1 = arith.constant 0 : index
    %0 = vector.load %arg1[%c0, %c0_0, %c0_1] : memref<2x4x256xf32, #tpu.memory_space<vmem>>, vector<2x4x256xf32>
    %cst = arith.constant dense<0.000000e+00> : vector<2x256xf32>
    %1 = vector.multi_reduction <add>, %0, %cst [1] : vector<2x4x256xf32> to vector<2x256xf32>
    %c0_2 = arith.constant 0 : index
    %c0_3 = arith.constant 0 : index
    %2 = vector.load %arg2[%c0_2, %c0_3] : memref<256x16xf32, #tpu.memory_space<vmem>>, vector<256x16xf32>
    %cst_4 = arith.constant dense<0.000000e+00> : vector<2x16xf32>
    %3 = tpu.matmul %1, %2, %cst_4 {dimension_numbers = #tpu.dot_dimension_numbers<[1], [0], [0], [1], [0, 0, 1, 1], [], []>} : vector<2x256xf32>, vector<256x16xf32>, vector<2x16xf32> -> vector<2x16xf32>
    %c0_5 = arith.constant 0 : index
    %c0_6 = arith.constant 0 : index
    %4 = vector.load %arg3[%c0_5, %c0_6] : memref<256x16xf32, #tpu.memory_space<vmem>>, vector<256x16xf32>
    %cst_7 = arith.constant dense<0.000000e+00> : vector<2x16xf32>
    %5 = tpu.matmul %1, %4, %cst_7 {dimension_numbers = #tpu.dot_dimension_numbers<[1], [0], [0], [1], [0, 0, 1, 1], [], []>} : vector<2x256xf32>, vector<256x16xf32>, vector<2x16xf32> -> vector<2x16xf32>
    %cst_8 = arith.constant 1.562500e-02 : f32
    %6 = vector.broadcast %cst_8 : f32 to vector<2x16xf32>
    %7 = arith.mulf %3, %6 : vector<2x16xf32>
    %cst_9 = arith.constant 1.562500e-02 : f32
    %8 = vector.broadcast %cst_9 : f32 to vector<2x16xf32>
    %9 = arith.mulf %5, %8 : vector<2x16xf32>
    %cst_10 = arith.constant dense<0.000000e+00> : vector<2xf32>
    %10 = vector.multi_reduction <add>, %1, %cst_10 [1] : vector<2x256xf32> to vector<2xf32>
    %11 = vector.shape_cast %10 : vector<2xf32> to vector<2x1xf32>
    %cst_11 = arith.constant 9.765625E-4 : f32
    %12 = vector.broadcast %cst_11 : f32 to vector<2x1xf32>
    %13 = arith.mulf %11, %12 : vector<2x1xf32>
    %c0_12 = arith.constant 0 : index
    %c0_13 = arith.constant 0 : index
    %c0_14 = arith.constant 0 : index
    %14 = vector.load %arg1[%c0_12, %c0_13, %c0_14] : memref<2x4x256xf32, #tpu.memory_space<vmem>>, vector<2x4x256xf32>
    %15 = vector.shape_cast %13 : vector<2x1xf32> to vector<2x1x1xf32>
    %16 = vector.broadcast %15 : vector<2x1x1xf32> to vector<2x4x256xf32>
    %17 = arith.subf %14, %16 : vector<2x4x256xf32>
    %18 = arith.mulf %17, %17 : vector<2x4x256xf32>
    %cst_15 = arith.constant dense<0.000000e+00> : vector<2x256xf32>
    %19 = vector.multi_reduction <add>, %18, %cst_15 [1] : vector<2x4x256xf32> to vector<2x256xf32>
    %c0_16 = arith.constant 0 : index
    %c0_17 = arith.constant 0 : index
    %20 = vector.load %arg2[%c0_16, %c0_17] : memref<256x16xf32, #tpu.memory_space<vmem>>, vector<256x16xf32>
    %cst_18 = arith.constant dense<0.000000e+00> : vector<2x16xf32>
    %21 = tpu.matmul %19, %20, %cst_18 {dimension_numbers = #tpu.dot_dimension_numbers<[1], [0], [0], [1], [0, 0, 1, 1], [], []>} : vector<2x256xf32>, vector<256x16xf32>, vector<2x16xf32> -> vector<2x16xf32>
    %c0_19 = arith.constant 0 : index
    %c0_20 = arith.constant 0 : index
    %22 = vector.load %arg3[%c0_19, %c0_20] : memref<256x16xf32, #tpu.memory_space<vmem>>, vector<256x16xf32>
    %cst_21 = arith.constant dense<0.000000e+00> : vector<2x16xf32>
    %23 = tpu.matmul %19, %22, %cst_21 {dimension_numbers = #tpu.dot_dimension_numbers<[1], [0], [0], [1], [0, 0, 1, 1], [], []>} : vector<2x256xf32>, vector<256x16xf32>, vector<2x16xf32> -> vector<2x16xf32>
    %24 = vector.broadcast %13 : vector<2x1xf32> to vector<2x16xf32>
    %25 = arith.subf %7, %24 : vector<2x16xf32>
    %26 = vector.broadcast %13 : vector<2x1xf32> to vector<2x16xf32>
    %27 = arith.subf %9, %26 : vector<2x16xf32>
    %cst_22 = arith.constant 6.400000e+01 : f32
    %28 = vector.broadcast %cst_22 : f32 to vector<2x16xf32>
    %29 = arith.mulf %28, %25 : vector<2x16xf32>
    %30 = arith.mulf %29, %25 : vector<2x16xf32>
    %31 = arith.subf %21, %30 : vector<2x16xf32>
    %cst_23 = arith.constant 0.000000e+00 : f32
    %32 = vector.broadcast %cst_23 : f32 to vector<2x16xf32>
    %33 = arith.maximumf %31, %32 : vector<2x16xf32>
    %cst_24 = arith.constant 0.0158730168 : f32
    %34 = vector.broadcast %cst_24 : f32 to vector<2x16xf32>
    %35 = arith.mulf %33, %34 : vector<2x16xf32>
    %cst_25 = arith.constant 6.400000e+01 : f32
    %36 = vector.broadcast %cst_25 : f32 to vector<2x16xf32>
    %37 = arith.mulf %36, %27 : vector<2x16xf32>
    %38 = arith.mulf %37, %27 : vector<2x16xf32>
    %39 = arith.subf %23, %38 : vector<2x16xf32>
    %cst_26 = arith.constant 0.000000e+00 : f32
    %40 = vector.broadcast %cst_26 : f32 to vector<2x16xf32>
    %41 = arith.maximumf %39, %40 : vector<2x16xf32>
    %cst_27 = arith.constant 0.0158730168 : f32
    %42 = vector.broadcast %cst_27 : f32 to vector<2x16xf32>
    %43 = arith.mulf %41, %42 : vector<2x16xf32>
    %44 = math.sqrt %35 : vector<2x16xf32>
    %45 = math.sqrt %43 : vector<2x16xf32>
    %c0_28 = arith.constant 0 : index
    %c0_29 = arith.constant 0 : index
    %46 = vector.load %arg6[%c0_28, %c0_29] : memref<16x16xf32, #tpu.memory_space<vmem>>, vector<16x16xf32>
    %cst_30 = arith.constant dense<0.000000e+00> : vector<2x16xf32>
    %47 = tpu.matmul %7, %46, %cst_30 {dimension_numbers = #tpu.dot_dimension_numbers<[1], [0], [0], [1], [0, 0, 1, 1], [], []>} : vector<2x16xf32>, vector<16x16xf32>, vector<2x16xf32> -> vector<2x16xf32>
    %c0_31 = arith.constant 0 : index
    %c0_32 = arith.constant 0 : index
    %48 = vector.load %arg7[%c0_31, %c0_32] : memref<16x16xf32, #tpu.memory_space<vmem>>, vector<16x16xf32>
    %cst_33 = arith.constant dense<0.000000e+00> : vector<2x16xf32>
    %49 = tpu.matmul %44, %48, %cst_33 {dimension_numbers = #tpu.dot_dimension_numbers<[1], [0], [0], [1], [0, 0, 1, 1], [], []>} : vector<2x16xf32>, vector<16x16xf32>, vector<2x16xf32> -> vector<2x16xf32>
    %50 = arith.addf %47, %49 : vector<2x16xf32>
    %51 = arith.negf %50 : vector<2x16xf32>
    %52 = math.exp %51 : vector<2x16xf32>
    %cst_34 = arith.constant 1.000000e+00 : f32
    %53 = vector.broadcast %cst_34 : f32 to vector<2x16xf32>
    %54 = arith.addf %53, %52 : vector<2x16xf32>
    %55 = arith.divf %53, %54 : vector<2x16xf32>
    %c0_35 = arith.constant 0 : index
    %c0_36 = arith.constant 0 : index
    %56 = vector.load %arg8[%c0_35, %c0_36] : memref<16x16xf32, #tpu.memory_space<vmem>>, vector<16x16xf32>
    %cst_37 = arith.constant dense<0.000000e+00> : vector<2x16xf32>
    %57 = tpu.matmul %9, %56, %cst_37 {dimension_numbers = #tpu.dot_dimension_numbers<[1], [0], [0], [1], [0, 0, 1, 1], [], []>} : vector<2x16xf32>, vector<16x16xf32>, vector<2x16xf32> -> vector<2x16xf32>
    %c0_38 = arith.constant 0 : index
    %c0_39 = arith.constant 0 : index
    %58 = vector.load %arg9[%c0_38, %c0_39] : memref<16x16xf32, #tpu.memory_space<vmem>>, vector<16x16xf32>
    %cst_40 = arith.constant dense<0.000000e+00> : vector<2x16xf32>
    %59 = tpu.matmul %45, %58, %cst_40 {dimension_numbers = #tpu.dot_dimension_numbers<[1], [0], [0], [1], [0, 0, 1, 1], [], []>} : vector<2x16xf32>, vector<16x16xf32>, vector<2x16xf32> -> vector<2x16xf32>
    %60 = arith.addf %57, %59 : vector<2x16xf32>
    %61 = arith.negf %60 : vector<2x16xf32>
    %62 = math.exp %61 : vector<2x16xf32>
    %cst_41 = arith.constant 1.000000e+00 : f32
    %63 = vector.broadcast %cst_41 : f32 to vector<2x16xf32>
    %64 = arith.addf %63, %62 : vector<2x16xf32>
    %65 = arith.divf %63, %64 : vector<2x16xf32>
    %c0_42 = arith.constant 0 : index
    %c0_43 = arith.constant 0 : index
    %66 = vector.load %arg4[%c0_42, %c0_43] : memref<16x256xf32, #tpu.memory_space<vmem>>, vector<16x256xf32>
    %cst_44 = arith.constant dense<0.000000e+00> : vector<2x256xf32>
    %67 = tpu.matmul %55, %66, %cst_44 {dimension_numbers = #tpu.dot_dimension_numbers<[1], [0], [0], [1], [0, 0, 1, 1], [], []>} : vector<2x16xf32>, vector<16x256xf32>, vector<2x256xf32> -> vector<2x256xf32>
    %c0_45 = arith.constant 0 : index
    %c0_46 = arith.constant 0 : index
    %68 = vector.load %arg5[%c0_45, %c0_46] : memref<16x256xf32, #tpu.memory_space<vmem>>, vector<16x256xf32>
    %cst_47 = arith.constant dense<0.000000e+00> : vector<2x256xf32>
    %69 = tpu.matmul %65, %68, %cst_47 {dimension_numbers = #tpu.dot_dimension_numbers<[1], [0], [0], [1], [0, 0, 1, 1], [], []>} : vector<2x16xf32>, vector<16x256xf32>, vector<2x256xf32> -> vector<2x256xf32>
    %70 = arith.addf %67, %69 : vector<2x256xf32>
    %cst_48 = arith.constant 5.000000e-01 : f32
    %71 = vector.broadcast %cst_48 : f32 to vector<2x256xf32>
    %72 = arith.mulf %71, %70 : vector<2x256xf32>
    %c0_49 = arith.constant 0 : index
    %c0_50 = arith.constant 0 : index
    %c0_51 = arith.constant 0 : index
    %73 = vector.load %arg1[%c0_49, %c0_50, %c0_51] : memref<2x4x256xf32, #tpu.memory_space<vmem>>, vector<2x4x256xf32>
    %74 = vector.shape_cast %72 : vector<2x256xf32> to vector<2x1x256xf32>
    %75 = vector.broadcast %74 : vector<2x1x256xf32> to vector<2x4x256xf32>
    %76 = arith.mulf %73, %75 : vector<2x4x256xf32>
    %c0_52 = arith.constant 0 : index
    %c0_53 = arith.constant 0 : index
    %c0_54 = arith.constant 0 : index
    %77 = vector.load %arg10[%c0_52, %c0_53, %c0_54] : memref<2x4x256xf32, #tpu.memory_space<vmem>>, vector<2x4x256xf32>
    tpu.vector_store %arg10[%c0_52, %c0_53, %c0_54], %76 {strides = array<i32>} : memref<2x4x256xf32, #tpu.memory_space<vmem>>, vector<2x4x256xf32>,
    return
  }
  func.func @transform_0(%arg0: i32) -> (i32, i32, i32) {
    %c0_i32 = arith.constant 0 : i32
    %c0_i32_0 = arith.constant 0 : i32
    %c0_i32_1 = arith.constant 0 : i32
    return %arg0, %c0_i32, %c0_i32_0 : i32, i32, i32
  }
  func.func @transform_1(%arg0: i32) -> (i32, i32) {
    %c0_i32 = arith.constant 0 : i32
    %c0_i32_0 = arith.constant 0 : i32
    %c0_i32_1 = arith.constant 0 : i32
    return %c0_i32, %c0_i32_0 : i32, i32
  }
  func.func @transform_2(%arg0: i32) -> (i32, i32) {
    %c0_i32 = arith.constant 0 : i32
    %c0_i32_0 = arith.constant 0 : i32
    %c0_i32_1 = arith.constant 0 : i32
    return %c0_i32, %c0_i32_0 : i32, i32
  }
  func.func @transform_3(%arg0: i32) -> (i32, i32) {
    %c0_i32 = arith.constant 0 : i32
    %c0_i32_0 = arith.constant 0 : i32
    %c0_i32_1 = arith.constant 0 : i32
    return %c0_i32, %c0_i32_0 : i32, i32
  }
  func.func @transform_4(%arg0: i32) -> (i32, i32) {
    %c0_i32 = arith.constant 0 : i32
    %c0_i32_0 = arith.constant 0 : i32
    %c0_i32_1 = arith.constant 0 : i32
    return %c0_i32, %c0_i32_0 : i32, i32
  }
  func.func @transform_5(%arg0: i32) -> (i32, i32) {
    %c0_i32 = arith.constant 0 : i32
    %c0_i32_0 = arith.constant 0 : i32
    %c0_i32_1 = arith.constant 0 : i32
    return %c0_i32, %c0_i32_0 : i32, i32
  }
  func.func @transform_6(%arg0: i32) -> (i32, i32) {
    %c0_i32 = arith.constant 0 : i32
    %c0_i32_0 = arith.constant 0 : i32
    %c0_i32_1 = arith.constant 0 : i32
    return %c0_i32, %c0_i32_0 : i32, i32
  }
  func.func @transform_7(%arg0: i32) -> (i32, i32) {
    %c0_i32 = arith.constant 0 : i32
    %c0_i32_0 = arith.constant 0 : i32
    %c0_i32_1 = arith.constant 0 : i32
    return %c0_i32, %c0_i32_0 : i32, i32
  }
  func.func @transform_8(%arg0: i32) -> (i32, i32) {
    %c0_i32 = arith.constant 0 : i32
    %c0_i32_0 = arith.constant 0 : i32
    %c0_i32_1 = arith.constant 0 : i32
    return %c0_i32, %c0_i32_0 : i32, i32
  }
  func.func @transform_9(%arg0: i32) -> (i32, i32, i32) {
    %c0_i32 = arith.constant 0 : i32
    %c0_i32_0 = arith.constant 0 : i32
    %c0_i32_1 = arith.constant 0 : i32
    return %arg0, %c0_i32, %c0_i32_0 : i32, i32, i32
  }
}

</mosaic_0001>

<llo_original>
// kernel: tpu_custom_call.1
$region0: #{tpu_custom_call.1}
  #allocation0 [shape = 'u32[]', space=smem, size = 0x4, offset = 0x4, fixed_abs, tag = 'smem constant byte address 0x4 - core index']
  #allocation1 [shape = 'u32[144,128]{1,0:T(1,128)}', space=vmem, size = 0x12000, scoped, tag = 'internal scratch']
  %s0 = inlined_call_operand.vmem [shape: f32[2,4,256], index: 0, kind: input, shape index: {}]
  %s1 = inlined_call_operand.vmem [shape: f32[256,16], index: 1, kind: input, shape index: {}]
  %s2 = inlined_call_operand.vmem [shape: f32[256,16], index: 2, kind: input, shape index: {}]
  %s3 = inlined_call_operand.vmem [shape: f32[16,256], index: 3, kind: input, shape index: {}]
  %s4 = inlined_call_operand.vmem [shape: f32[16,256], index: 4, kind: input, shape index: {}]
  %s5 = inlined_call_operand.vmem [shape: f32[16,16], index: 5, kind: input, shape index: {}]
  %s6 = inlined_call_operand.vmem [shape: f32[16,16], index: 6, kind: input, shape index: {}]
  %s7 = inlined_call_operand.vmem [shape: f32[16,16], index: 7, kind: input, shape index: {}]
  %s8 = inlined_call_operand.vmem [shape: f32[16,16], index: 8, kind: input, shape index: {}]
  %s9 = inlined_call_operand.hbm [shape: f32[2,4,256], index: 9, kind: output, shape index: {}]
  %s10 = sld [smem:[#allocation0]]
  $region46: #{tpu_custom_call.1} parent=0
    _
  %s12 = ssub.s32 1, %s10
  %s13 = scalar_select 0, %s12, %s10
  $region1: #{tpu_custom_call.1} parent=0
    #allocation2 [shape = 'u8[8192]{0}', space=vmem, size = 0x2000, scoped, tag = 'output window, operand 0, single buffered']
    #allocation3 [shape = 's32[1]{0}', space=sflag, size = 0x4, scoped, tag = 'scoped memory for tpu_custom_call.1']
    %14 = vsyncpa [#allocation3], 0
    // Predicated region
    $region2: #{tpu_custom_call.1} parent=1 // pred_check
      _
    $region3: #{tpu_custom_call.1} parent=1 // pred_check_branch
      %16 = sbr.rel (0) target = $region5
    $region4: #{tpu_custom_call.1} parent=1 // pred_region
      _
    $region5: #{tpu_custom_call.1} parent=1 // pred_fallthru
      _
    // Predicated region
    $region6: #{tpu_custom_call.1} parent=1 // pred_check
      _
    $region7: #{tpu_custom_call.1} parent=1 // pred_check_branch
      %18 = sbr.rel (0) target = $region9
    $region8: #{tpu_custom_call.1} parent=1 // pred_region
      _
    $region9: #{tpu_custom_call.1} parent=1 // pred_fallthru
      _
    // Predicated region
    $region10: #{tpu_custom_call.1} parent=1 // pred_check
      _
    $region11: #{tpu_custom_call.1} parent=1 // pred_check_branch
      %20 = sbr.rel (0) target = $region13
    $region12: #{tpu_custom_call.1} parent=1 // pred_region
      _
    $region13: #{tpu_custom_call.1} parent=1 // pred_fallthru
      _
    // Predicated region
    $region14: #{tpu_custom_call.1} parent=1 // pred_check
      _
    $region15: #{tpu_custom_call.1} parent=1 // pred_check_branch
      %22 = sbr.rel (0) target = $region17
    $region16: #{tpu_custom_call.1} parent=1 // pred_region
      _
    $region17: #{tpu_custom_call.1} parent=1 // pred_fallthru
      _
    // Predicated region
    $region18: #{tpu_custom_call.1} parent=1 // pred_check
      _
    $region19: #{tpu_custom_call.1} parent=1 // pred_check_branch
      %24 = sbr.rel (0) target = $region21
    $region20: #{tpu_custom_call.1} parent=1 // pred_region
      _
    $region21: #{tpu_custom_call.1} parent=1 // pred_fallthru
      _
    // Predicated region
    $region22: #{tpu_custom_call.1} parent=1 // pred_check
      _
    $region23: #{tpu_custom_call.1} parent=1 // pred_check_branch
      %26 = sbr.rel (0) target = $region25
    $region24: #{tpu_custom_call.1} parent=1 // pred_region
      _
    $region25: #{tpu_custom_call.1} parent=1 // pred_fallthru
      _
    // Predicated region
    $region26: #{tpu_custom_call.1} parent=1 // pred_check
      _
    $region27: #{tpu_custom_call.1} parent=1 // pred_check_branch
      %28 = sbr.rel (0) target = $region29
    $region28: #{tpu_custom_call.1} parent=1 // pred_region
      _
    $region29: #{tpu_custom_call.1} parent=1 // pred_fallthru
      _
    // Predicated region
    $region30: #{tpu_custom_call.1} parent=1 // pred_check
      _
    $region31: #{tpu_custom_call.1} parent=1 // pred_check_branch
      %30 = sbr.rel (0) target = $region33
    $region32: #{tpu_custom_call.1} parent=1 // pred_region
      _
    $region33: #{tpu_custom_call.1} parent=1 // pred_fallthru
      _
    // Predicated region
    $region34: #{tpu_custom_call.1} parent=1 // pred_check
      _
    $region35: #{tpu_custom_call.1} parent=1 // pred_check_branch
      %32 = sbr.rel (0) target = $region37
    $region36: #{tpu_custom_call.1} parent=1 // pred_region
      _
    $region37: #{tpu_custom_call.1} parent=1 // pred_fallthru
      _
    %v33 = vld [vmem:[%s0] sm:$0xff]
    %v34 = vld [vmem:[%s0 + $0x8] sm:$0xff]
    %v37 = vcombine.high %v33, %v33
    %v38 = vcombine.high %v34, %v34
    %vm41 = vcmask 1043456
    %v42 = vsel %vm41, %v33, 0.0
    %v43 = vrot.slane %v42, 4
    %v44 = vadd.f32 %v42, %v43
    %v45 = vrot.slane %v44, 2
    %v46 = vadd.f32 %v44, %v45
    %v47 = vrot.slane %v46, 1
    %v48 = vadd.f32 %v46, %v47
    %v49 = vsel %vm41, %v37, 0.0
    %v50 = vrot.slane %v49, 4
    %v51 = vadd.f32 %v49, %v50
    %v52 = vrot.slane %v51, 2
    %v53 = vadd.f32 %v51, %v52
    %v54 = vrot.slane %v53, 1
    %v55 = vadd.f32 %v53, %v54
    %v56 = vsel %vm41, %v34, 0.0
    %v57 = vrot.slane %v56, 4
    %v58 = vadd.f32 %v56, %v57
    %v59 = vrot.slane %v58, 2
    %v60 = vadd.f32 %v58, %v59
    %v61 = vrot.slane %v60, 1
    %v62 = vadd.f32 %v60, %v61
    %v63 = vsel %vm41, %v38, 0.0
    %v64 = vrot.slane %v63, 4
    %v65 = vadd.f32 %v63, %v64
    %v66 = vrot.slane %v65, 2
    %v67 = vadd.f32 %v65, %v66
    %v68 = vrot.slane %v67, 1
    %v69 = vadd.f32 %v67, %v68
    %v70 = vld [vmem:[%s1] sm:$0xff]
    %v71 = vld [vmem:[%s1 + $0x8] sm:$0xff]
    %v72 = vld [vmem:[%s1 + $0x10] sm:$0xff]
    %v73 = vld [vmem:[%s1 + $0x18] sm:$0xff]
    %v74 = vld [vmem:[%s1 + $0x20] sm:$0xff]
    %v75 = vld [vmem:[%s1 + $0x28] sm:$0xff]
    %v76 = vld [vmem:[%s1 + $0x30] sm:$0xff]
    %v77 = vld [vmem:[%s1 + $0x38] sm:$0xff]
    %v78 = vld [vmem:[%s1 + $0x40] sm:$0xff]
    %v79 = vld [vmem:[%s1 + $0x48] sm:$0xff]
    %v80 = vld [vmem:[%s1 + $0x50] sm:$0xff]
    %v81 = vld [vmem:[%s1 + $0x58] sm:$0xff]
    %v82 = vld [vmem:[%s1 + $0x60] sm:$0xff]
    %v83 = vld [vmem:[%s1 + $0x68] sm:$0xff]
    %v84 = vld [vmem:[%s1 + $0x70] sm:$0xff]
    %v85 = vld [vmem:[%s1 + $0x78] sm:$0xff]
    %v86 = vld [vmem:[%s1 + $0x80] sm:$0xff]
    %v87 = vld [vmem:[%s1 + $0x88] sm:$0xff]
    %v88 = vld [vmem:[%s1 + $0x90] sm:$0xff]
    %v89 = vld [vmem:[%s1 + $0x98] sm:$0xff]
    %v90 = vld [vmem:[%s1 + $0xa0] sm:$0xff]
    %v91 = vld [vmem:[%s1 + $0xa8] sm:$0xff]
    %v92 = vld [vmem:[%s1 + $0xb0] sm:$0xff]
    %v93 = vld [vmem:[%s1 + $0xb8] sm:$0xff]
    %v94 = vld [vmem:[%s1 + $0xc0] sm:$0xff]
    %v95 = vld [vmem:[%s1 + $0xc8] sm:$0xff]
    %v96 = vld [vmem:[%s1 + $0xd0] sm:$0xff]
    %v97 = vld [vmem:[%s1 + $0xd8] sm:$0xff]
    %v98 = vld [vmem:[%s1 + $0xe0] sm:$0xff]
    %v99 = vld [vmem:[%s1 + $0xe8] sm:$0xff]
    %v100 = vld [vmem:[%s1 + $0xf0] sm:$0xff]
    %v101 = vld [vmem:[%s1 + $0xf8] sm:$0xff]
    %vm106 = vcmask 1041409
    %v107 = vsel %vm106, %v62, %v48
    %v108 = vsel %vm106, %v69, %v55
    %111 = vmatprep.subr.mxu0 0.0
    %112 = vmatpush1.msra.mxu0 %v85
    %113 = vmatprep.subr.mxu0 0.0
    %114 = vmatpush1.msra.mxu0 %v84
    %115 = vmatprep.subr.mxu0 0.0
    %116 = vmatpush1.msra.mxu0 %v83
    %117 = vmatprep.subr.mxu0 0.0
    %118 = vmatpush1.msra.mxu0 %v82
    %119 = vmatprep.subr.mxu0 0.0
    %120 = vmatpush1.msra.mxu0 %v81
    %121 = vmatprep.subr.mxu0 0.0
    %122 = vmatpush1.msra.mxu0 %v80
    %123 = vmatprep.subr.mxu0 0.0
    %124 = vmatpush1.msra.mxu0 %v79
    %125 = vmatprep.subr.mxu0 0.0
    %126 = vmatpush1.msra.mxu0 %v78
    %127 = vmatprep.subr.mxu0 0.0
    %128 = vmatpush1.msra.mxu0 %v77
    %129 = vmatprep.subr.mxu0 0.0
    %130 = vmatpush1.msra.mxu0 %v76
    %131 = vmatprep.subr.mxu0 0.0
    %132 = vmatpush1.msra.mxu0 %v75
    %133 = vmatprep.subr.mxu0 0.0
    %134 = vmatpush1.msra.mxu0 %v74
    %135 = vmatprep.subr.mxu0 0.0
    %136 = vmatpush1.msra.mxu0 %v73
    %137 = vmatprep.subr.mxu0 0.0
    %138 = vmatpush1.msra.mxu0 %v72
    %139 = vmatprep.subr.mxu0 0.0
    %140 = vmatpush1.msra.mxu0 %v71
    %141 = vmatprep.subr.mxu0 0.0
    %142 = vmatpush1.msra.mxu0 %v70
    %143 = vmatprep.subr.mxu0 0.0
    %144 = vmatpush2.msra.mxu0 %v101
    %145 = vmatprep.subr.mxu0 0.0
    %146 = vmatpush2.msra.mxu0 %v100
    %147 = vmatprep.subr.mxu0 0.0
    %148 = vmatpush2.msra.mxu0 %v99
    %149 = vmatprep.subr.mxu0 0.0
    %150 = vmatpush2.msra.mxu0 %v98
    %151 = vmatprep.subr.mxu0 0.0
    %152 = vmatpush2.msra.mxu0 %v97
    %153 = vmatprep.subr.mxu0 0.0
    %154 = vmatpush2.msra.mxu0 %v96
    %155 = vmatprep.subr.mxu0 0.0
    %156 = vmatpush2.msra.mxu0 %v95
    %157 = vmatprep.subr.mxu0 0.0
    %158 = vmatpush2.msra.mxu0 %v94
    %159 = vmatprep.subr.mxu0 0.0
    %160 = vmatpush2.msra.mxu0 %v93
    %161 = vmatprep.subr.mxu0 0.0
    %162 = vmatpush2.msra.mxu0 %v92
    %163 = vmatprep.subr.mxu0 0.0
    %164 = vmatpush2.msra.mxu0 %v91
    %165 = vmatprep.subr.mxu0 0.0
    %166 = vmatpush2.msra.mxu0 %v90
    %167 = vmatprep.subr.mxu0 0.0
    %168 = vmatpush2.msra.mxu0 %v89
    %169 = vmatprep.subr.mxu0 0.0
    %170 = vmatpush2.msra.mxu0 %v88
    %171 = vmatprep.subr.mxu0 0.0
    %172 = vmatpush2.msra.mxu0 %v87
    %173 = vmatprep.subr.mxu0 0.0
    %174 = vmatpush2.msra.mxu0 %v86
    %175 = vmatprep.mubr.f32.mxu0 %v108
    %176 = vmatmul.mubr.f32.gmra.mxu0 %v107
    %v177 = vpop.f32.mrf.mxu0
    %v178 = vadd.f32 0.0, %v177
    %v179 = vpop.f32.mrf.mxu0
    %180 = vdwg.mxu0
    %v181 = vld [vmem:[%s2] sm:$0xff]
    %v182 = vld [vmem:[%s2 + $0x8] sm:$0xff]
    %v183 = vld [vmem:[%s2 + $0x10] sm:$0xff]
    %v184 = vld [vmem:[%s2 + $0x18] sm:$0xff]
    %v185 = vld [vmem:[%s2 + $0x20] sm:$0xff]
    %v186 = vld [vmem:[%s2 + $0x28] sm:$0xff]
    %v187 = vld [vmem:[%s2 + $0x30] sm:$0xff]
    %v188 = vld [vmem:[%s2 + $0x38] sm:$0xff]
    %v189 = vld [vmem:[%s2 + $0x40] sm:$0xff]
    %v190 = vld [vmem:[%s2 + $0x48] sm:$0xff]
    %v191 = vld [vmem:[%s2 + $0x50] sm:$0xff]
    %v192 = vld [vmem:[%s2 + $0x58] sm:$0xff]
    %v193 = vld [vmem:[%s2 + $0x60] sm:$0xff]
    %v194 = vld [vmem:[%s2 + $0x68] sm:$0xff]
    %v195 = vld [vmem:[%s2 + $0x70] sm:$0xff]
    %v196 = vld [vmem:[%s2 + $0x78] sm:$0xff]
    %v197 = vld [vmem:[%s2 + $0x80] sm:$0xff]
    %v198 = vld [vmem:[%s2 + $0x88] sm:$0xff]
    %v199 = vld [vmem:[%s2 + $0x90] sm:$0xff]
    %v200 = vld [vmem:[%s2 + $0x98] sm:$0xff]
    %v201 = vld [vmem:[%s2 + $0xa0] sm:$0xff]
    %v202 = vld [vmem:[%s2 + $0xa8] sm:$0xff]
    %v203 = vld [vmem:[%s2 + $0xb0] sm:$0xff]
    %v204 = vld [vmem:[%s2 + $0xb8] sm:$0xff]
    %v205 = vld [vmem:[%s2 + $0xc0] sm:$0xff]
    %v206 = vld [vmem:[%s2 + $0xc8] sm:$0xff]
    %v207 = vld [vmem:[%s2 + $0xd0] sm:$0xff]
    %v208 = vld [vmem:[%s2 + $0xd8] sm:$0xff]
    %v209 = vld [vmem:[%s2 + $0xe0] sm:$0xff]
    %v210 = vld [vmem:[%s2 + $0xe8] sm:$0xff]
    %v211 = vld [vmem:[%s2 + $0xf0] sm:$0xff]
    %v212 = vld [vmem:[%s2 + $0xf8] sm:$0xff]
    %213 = vmatprep.subr.mxu0 0.0
    %214 = vmatpush1.msra.mxu0 %v196
    %215 = vmatprep.subr.mxu0 0.0
    %216 = vmatpush1.msra.mxu0 %v195
    %217 = vmatprep.subr.mxu0 0.0
    %218 = vmatpush1.msra.mxu0 %v194
    %219 = vmatprep.subr.mxu0 0.0
    %220 = vmatpush1.msra.mxu0 %v193
    %221 = vmatprep.subr.mxu0 0.0
    %222 = vmatpush1.msra.mxu0 %v192
    %223 = vmatprep.subr.mxu0 0.0
    %224 = vmatpush1.msra.mxu0 %v191
    %225 = vmatprep.subr.mxu0 0.0
    %226 = vmatpush1.msra.mxu0 %v190
    %227 = vmatprep.subr.mxu0 0.0
    %228 = vmatpush1.msra.mxu0 %v189
    %229 = vmatprep.subr.mxu0 0.0
    %230 = vmatpush1.msra.mxu0 %v188
    %231 = vmatprep.subr.mxu0 0.0
    %232 = vmatpush1.msra.mxu0 %v187
    %233 = vmatprep.subr.mxu0 0.0
    %234 = vmatpush1.msra.mxu0 %v186
    %235 = vmatprep.subr.mxu0 0.0
    %236 = vmatpush1.msra.mxu0 %v185
    %237 = vmatprep.subr.mxu0 0.0
    %238 = vmatpush1.msra.mxu0 %v184
    %239 = vmatprep.subr.mxu0 0.0
    %240 = vmatpush1.msra.mxu0 %v183
    %241 = vmatprep.subr.mxu0 0.0
    %242 = vmatpush1.msra.mxu0 %v182
    %243 = vmatprep.subr.mxu0 0.0
    %244 = vmatpush1.msra.mxu0 %v181
    %245 = vmatprep.subr.mxu0 0.0
    %246 = vmatpush2.msra.mxu0 %v212
    %247 = vmatprep.subr.mxu0 0.0
    %248 = vmatpush2.msra.mxu0 %v211
    %249 = vmatprep.subr.mxu0 0.0
    %250 = vmatpush2.msra.mxu0 %v210
    %251 = vmatprep.subr.mxu0 0.0
    %252 = vmatpush2.msra.mxu0 %v209
    %253 = vmatprep.subr.mxu0 0.0
    %254 = vmatpush2.msra.mxu0 %v208
    %255 = vmatprep.subr.mxu0 0.0
    %256 = vmatpush2.msra.mxu0 %v207
    %257 = vmatprep.subr.mxu0 0.0
    %258 = vmatpush2.msra.mxu0 %v206
    %259 = vmatprep.subr.mxu0 0.0
    %260 = vmatpush2.msra.mxu0 %v205
    %261 = vmatprep.subr.mxu0 0.0
    %262 = vmatpush2.msra.mxu0 %v204
    %263 = vmatprep.subr.mxu0 0.0
    %264 = vmatpush2.msra.mxu0 %v203
    %265 = vmatprep.subr.mxu0 0.0
    %266 = vmatpush2.msra.mxu0 %v202
    %267 = vmatprep.subr.mxu0 0.0
    %268 = vmatpush2.msra.mxu0 %v201
    %269 = vmatprep.subr.mxu0 0.0
    %270 = vmatpush2.msra.mxu0 %v200
    %271 = vmatprep.subr.mxu0 0.0
    %272 = vmatpush2.msra.mxu0 %v199
    %273 = vmatprep.subr.mxu0 0.0
    %274 = vmatpush2.msra.mxu0 %v198
    %275 = vmatprep.subr.mxu0 0.0
    %276 = vmatpush2.msra.mxu0 %v197
    %277 = vmatprep.mubr.f32.mxu0 %v108
    %278 = vmatmul.mubr.f32.gmra.mxu0 %v107
    %v279 = vpop.f32.mrf.mxu0
    %v280 = vadd.f32 0.0, %v279
    %v281 = vpop.f32.mrf.mxu0
    %282 = vdwg.mxu0
    %v283 = vmul.f32 %v178, 0.015625
    %v284 = vmul.f32 %v280, 0.015625
    %vm285 = vcmask 1041408
    %v286 = vsel %vm285, %v107, 0.0
    %v287 = vsel %vm285, %v108, 0.0
    %v288 = vadd.f32 %v286, %v287
    %289 = vadd.xlane.f32.xlu0 %v288
    %v290 = vpop.xlane.xlu0 %289
    %v291 = vmul.f32 %v290, 0.0009765625
    %v293 = vlaneseq
    %v294 = vshrl.u32 %v293, 7
    %v295 = vsub.s32 0, %v294
    %v296 = vrot.slane %v291, %v295
    %v297 = vlaneseq
    %v298 = vshrl.u32 %v297, 7
    %v299 = vsub.s32 1, %v298
    %v300 = vrot.slane %v291, %v299
    %v303 = vsub.f32 %v33, %v296
    %v304 = vsub.f32 %v34, %v300
    %v305 = vmul.f32 %v303, %v303
    %v306 = vmul.f32 %v304, %v304
    %v309 = vcombine.high %v305, %v305
    %v310 = vcombine.high %v306, %v306
    %v313 = vsel %vm41, %v305, 0.0
    %v314 = vrot.slane %v313, 4
    %v315 = vadd.f32 %v313, %v314
    %v316 = vrot.slane %v315, 2
    %v317 = vadd.f32 %v315, %v316
    %v318 = vrot.slane %v317, 1
    %v319 = vadd.f32 %v317, %v318
    %v320 = vsel %vm41, %v309, 0.0
    %v321 = vrot.slane %v320, 4
    %v322 = vadd.f32 %v320, %v321
    %v323 = vrot.slane %v322, 2
    %v324 = vadd.f32 %v322, %v323
    %v325 = vrot.slane %v324, 1
    %v326 = vadd.f32 %v324, %v325
    %v327 = vsel %vm41, %v306, 0.0
    %v328 = vrot.slane %v327, 4
    %v329 = vadd.f32 %v327, %v328
    %v330 = vrot.slane %v329, 2
    %v331 = vadd.f32 %v329, %v330
    %v332 = vrot.slane %v331, 1
    %v333 = vadd.f32 %v331, %v332
    %v334 = vsel %vm41, %v310, 0.0
    %v335 = vrot.slane %v334, 4
    %v336 = vadd.f32 %v334, %v335
    %v337 = vrot.slane %v336, 2
    %v338 = vadd.f32 %v336, %v337
    %v339 = vrot.slane %v338, 1
    %v340 = vadd.f32 %v338, %v339
    %v345 = vsel %vm106, %v333, %v319
    %v346 = vsel %vm106, %v340, %v326
    %349 = vmatprep.subr.mxu0 0.0
    %350 = vmatpush1.msra.mxu0 %v85
    %351 = vmatprep.subr.mxu0 0.0
    %352 = vmatpush1.msra.mxu0 %v84
    %353 = vmatprep.subr.mxu0 0.0
    %354 = vmatpush1.msra.mxu0 %v83
    %355 = vmatprep.subr.mxu0 0.0
    %356 = vmatpush1.msra.mxu0 %v82
    %357 = vmatprep.subr.mxu0 0.0
    %358 = vmatpush1.msra.mxu0 %v81
    %359 = vmatprep.subr.mxu0 0.0
    %360 = vmatpush1.msra.mxu0 %v80
    %361 = vmatprep.subr.mxu0 0.0
    %362 = vmatpush1.msra.mxu0 %v79
    %363 = vmatprep.subr.mxu0 0.0
    %364 = vmatpush1.msra.mxu0 %v78
    %365 = vmatprep.subr.mxu0 0.0
    %366 = vmatpush1.msra.mxu0 %v77
    %367 = vmatprep.subr.mxu0 0.0
    %368 = vmatpush1.msra.mxu0 %v76
    %369 = vmatprep.subr.mxu0 0.0
    %370 = vmatpush1.msra.mxu0 %v75
    %371 = vmatprep.subr.mxu0 0.0
    %372 = vmatpush1.msra.mxu0 %v74
    %373 = vmatprep.subr.mxu0 0.0
    %374 = vmatpush1.msra.mxu0 %v73
    %375 = vmatprep.subr.mxu0 0.0
    %376 = vmatpush1.msra.mxu0 %v72
    %377 = vmatprep.subr.mxu0 0.0
    %378 = vmatpush1.msra.mxu0 %v71
    %379 = vmatprep.subr.mxu0 0.0
    %380 = vmatpush1.msra.mxu0 %v70
    %381 = vmatprep.subr.mxu0 0.0
    %382 = vmatpush2.msra.mxu0 %v101
    %383 = vmatprep.subr.mxu0 0.0
    %384 = vmatpush2.msra.mxu0 %v100
    %385 = vmatprep.subr.mxu0 0.0
    %386 = vmatpush2.msra.mxu0 %v99
    %387 = vmatprep.subr.mxu0 0.0
    %388 = vmatpush2.msra.mxu0 %v98
    %389 = vmatprep.subr.mxu0 0.0
    %390 = vmatpush2.msra.mxu0 %v97
    %391 = vmatprep.subr.mxu0 0.0
    %392 = vmatpush2.msra.mxu0 %v96
    %393 = vmatprep.subr.mxu0 0.0
    %394 = vmatpush2.msra.mxu0 %v95
    %395 = vmatprep.subr.mxu0 0.0
    %396 = vmatpush2.msra.mxu0 %v94
    %397 = vmatprep.subr.mxu0 0.0
    %398 = vmatpush2.msra.mxu0 %v93
    %399 = vmatprep.subr.mxu0 0.0
    %400 = vmatpush2.msra.mxu0 %v92
    %401 = vmatprep.subr.mxu0 0.0
    %402 = vmatpush2.msra.mxu0 %v91
    %403 = vmatprep.subr.mxu0 0.0
    %404 = vmatpush2.msra.mxu0 %v90
    %405 = vmatprep.subr.mxu0 0.0
    %406 = vmatpush2.msra.mxu0 %v89
    %407 = vmatprep.subr.mxu0 0.0
    %408 = vmatpush2.msra.mxu0 %v88
    %409 = vmatprep.subr.mxu0 0.0
    %410 = vmatpush2.msra.mxu0 %v87
    %411 = vmatprep.subr.mxu0 0.0
    %412 = vmatpush2.msra.mxu0 %v86
    %413 = vmatprep.mubr.f32.mxu0 %v346
    %414 = vmatmul.mubr.f32.gmra.mxu0 %v345
    %v415 = vpop.f32.mrf.mxu0
    %v416 = vadd.f32 0.0, %v415
    %v417 = vpop.f32.mrf.mxu0
    %418 = vdwg.mxu0
    %419 = vmatprep.subr.mxu0 0.0
    %420 = vmatpush1.msra.mxu0 %v196
    %421 = vmatprep.subr.mxu0 0.0
    %422 = vmatpush1.msra.mxu0 %v195
    %423 = vmatprep.subr.mxu0 0.0
    %424 = vmatpush1.msra.mxu0 %v194
    %425 = vmatprep.subr.mxu0 0.0
    %426 = vmatpush1.msra.mxu0 %v193
    %427 = vmatprep.subr.mxu0 0.0
    %428 = vmatpush1.msra.mxu0 %v192
    %429 = vmatprep.subr.mxu0 0.0
    %430 = vmatpush1.msra.mxu0 %v191
    %431 = vmatprep.subr.mxu0 0.0
    %432 = vmatpush1.msra.mxu0 %v190
    %433 = vmatprep.subr.mxu0 0.0
    %434 = vmatpush1.msra.mxu0 %v189
    %435 = vmatprep.subr.mxu0 0.0
    %436 = vmatpush1.msra.mxu0 %v188
    %437 = vmatprep.subr.mxu0 0.0
    %438 = vmatpush1.msra.mxu0 %v187
    %439 = vmatprep.subr.mxu0 0.0
    %440 = vmatpush1.msra.mxu0 %v186
    %441 = vmatprep.subr.mxu0 0.0
    %442 = vmatpush1.msra.mxu0 %v185
    %443 = vmatprep.subr.mxu0 0.0
    %444 = vmatpush1.msra.mxu0 %v184
    %445 = vmatprep.subr.mxu0 0.0
    %446 = vmatpush1.msra.mxu0 %v183
    %447 = vmatprep.subr.mxu0 0.0
    %448 = vmatpush1.msra.mxu0 %v182
    %449 = vmatprep.subr.mxu0 0.0
    %450 = vmatpush1.msra.mxu0 %v181
    %451 = vmatprep.subr.mxu0 0.0
    %452 = vmatpush2.msra.mxu0 %v212
    %453 = vmatprep.subr.mxu0 0.0
    %454 = vmatpush2.msra.mxu0 %v211
    %455 = vmatprep.subr.mxu0 0.0
    %456 = vmatpush2.msra.mxu0 %v210
    %457 = vmatprep.subr.mxu0 0.0
    %458 = vmatpush2.msra.mxu0 %v209
    %459 = vmatprep.subr.mxu0 0.0
    %460 = vmatpush2.msra.mxu0 %v208
    %461 = vmatprep.subr.mxu0 0.0
    %462 = vmatpush2.msra.mxu0 %v207
    %463 = vmatprep.subr.mxu0 0.0
    %464 = vmatpush2.msra.mxu0 %v206
    %465 = vmatprep.subr.mxu0 0.0
    %466 = vmatpush2.msra.mxu0 %v205
    %467 = vmatprep.subr.mxu0 0.0
    %468 = vmatpush2.msra.mxu0 %v204
    %469 = vmatprep.subr.mxu0 0.0
    %470 = vmatpush2.msra.mxu0 %v203
    %471 = vmatprep.subr.mxu0 0.0
    %472 = vmatpush2.msra.mxu0 %v202
    %473 = vmatprep.subr.mxu0 0.0
    %474 = vmatpush2.msra.mxu0 %v201
    %475 = vmatprep.subr.mxu0 0.0
    %476 = vmatpush2.msra.mxu0 %v200
    %477 = vmatprep.subr.mxu0 0.0
    %478 = vmatpush2.msra.mxu0 %v199
    %479 = vmatprep.subr.mxu0 0.0
    %480 = vmatpush2.msra.mxu0 %v198
    %481 = vmatprep.subr.mxu0 0.0
    %482 = vmatpush2.msra.mxu0 %v197
    %483 = vmatprep.mubr.f32.mxu0 %v346
    %484 = vmatmul.mubr.f32.gmra.mxu0 %v345
    %v485 = vpop.f32.mrf.mxu0
    %v486 = vadd.f32 0.0, %v485
    %v487 = vpop.f32.mrf.mxu0
    %488 = vdwg.mxu0
    %v489 = vsub.f32 %v283, %v291
    %v490 = vsub.f32 %v284, %v291
    %v491 = vmul.f32 %v489, 64.0
    %v492 = vmul.f32 %v491, %v489
    %v493 = vsub.f32 %v416, %v492
    %v494 = vmax.f32 %v493, 0.0
    %v495 = vmul.f32 %v494, 0.015873017
    %v496 = vmul.f32 %v490, 64.0
    %v497 = vmul.f32 %v496, %v490
    %v498 = vsub.f32 %v486, %v497
    %v499 = vmax.f32 %v498, 0.0
    %v500 = vmul.f32 %v499, 0.015873017
    %v501 = vrsqrt.pop %v495
    %v502 = vmul.f32 %v495, %v501
    %vm503 = vcmp.eq.f32.partialorder %v495, inf
    %v504 = vsel %vm503, %v495, %v502
    %vm505 = vcmp.eq.f32.partialorder %v495, 0.0
    %v506 = vand.u32 %v495, 2147483648
    %v507 = vsel %vm505, %v506, %v504
    %v508 = vrsqrt.pop %v500
    %v509 = vmul.f32 %v500, %v508
    %vm510 = vcmp.eq.f32.partialorder %v500, inf
    %v511 = vsel %vm510, %v500, %v509
    %vm512 = vcmp.eq.f32.partialorder %v500, 0.0
    %v513 = vand.u32 %v500, 2147483648
    %v514 = vsel %vm512, %v513, %v511
    %v515 = vld [vmem:[%s5] sm:$0xff]
    %v516 = vld [vmem:[%s5 + $0x8] sm:$0xff]
    %v517 = vld [vmem:[%s6] sm:$0xff]
    %v518 = vld [vmem:[%s6 + $0x8] sm:$0xff]
    %vm519 = vcmask 130048
    %v521 = vsel %vm519, %v507, 0
    %523 = vmatprep.subr.mxu0 0.0
    %524 = vmatpush1.msra.mxu0 0.0
    %525 = vmatprep.subr.mxu0 0.0
    %526 = vmatpush1.msra.mxu0 0.0
    %527 = vmatprep.subr.mxu0 0.0
    %528 = vmatpush1.msra.mxu0 0.0
    %529 = vmatprep.subr.mxu0 0.0
    %530 = vmatpush1.msra.mxu0 0.0
    %531 = vmatprep.subr.mxu0 0.0
    %532 = vmatpush1.msra.mxu0 0.0
    %533 = vmatprep.subr.mxu0 0.0
    %534 = vmatpush1.msra.mxu0 0.0
    %535 = vmatprep.subr.mxu0 0.0
    %536 = vmatpush1.msra.mxu0 0.0
    %537 = vmatprep.subr.mxu0 0.0
    %538 = vmatpush1.msra.mxu0 0.0
    %539 = vmatprep.subr.mxu0 0.0
    %540 = vmatpush1.msra.mxu0 0.0
    %541 = vmatprep.subr.mxu0 0.0
    %542 = vmatpush1.msra.mxu0 0.0
    %543 = vmatprep.subr.mxu0 0.0
    %544 = vmatpush1.msra.mxu0 0.0
    %545 = vmatprep.subr.mxu0 0.0
    %546 = vmatpush1.msra.mxu0 0.0
    %547 = vmatprep.subr.mxu0 0.0
    %548 = vmatpush1.msra.mxu0 0.0
    %549 = vmatprep.subr.mxu0 0.0
    %550 = vmatpush1.msra.mxu0 0.0
    %551 = vmatprep.subr.mxu0 0.0
    %552 = vmatpush1.msra.mxu0 %v518
    %553 = vmatprep.subr.mxu0 0.0
    %554 = vmatpush1.msra.mxu0 %v517
    %555 = vmatprep.subr.mxu0 0.0
    %556 = vmatpush2.msra.mxu0 0.0
    %557 = vmatprep.subr.mxu0 0.0
    %558 = vmatpush2.msra.mxu0 0.0
    %559 = vmatprep.subr.mxu0 0.0
    %560 = vmatpush2.msra.mxu0 0.0
    %561 = vmatprep.subr.mxu0 0.0
    %562 = vmatpush2.msra.mxu0 0.0
    %563 = vmatprep.subr.mxu0 0.0
    %564 = vmatpush2.msra.mxu0 0.0
    %565 = vmatprep.subr.mxu0 0.0
    %566 = vmatpush2.msra.mxu0 0.0
    %567 = vmatprep.subr.mxu0 0.0
    %568 = vmatpush2.msra.mxu0 0.0
    %569 = vmatprep.subr.mxu0 0.0
    %570 = vmatpush2.msra.mxu0 0.0
    %571 = vmatprep.subr.mxu0 0.0
    %572 = vmatpush2.msra.mxu0 0.0
    %573 = vmatprep.subr.mxu0 0.0
    %574 = vmatpush2.msra.mxu0 0.0
    %575 = vmatprep.subr.mxu0 0.0
    %576 = vmatpush2.msra.mxu0 0.0
    %577 = vmatprep.subr.mxu0 0.0
    %578 = vmatpush2.msra.mxu0 0.0
    %579 = vmatprep.subr.mxu0 0.0
    %580 = vmatpush2.msra.mxu0 0.0
    %581 = vmatprep.subr.mxu0 0.0
    %582 = vmatpush2.msra.mxu0 0.0
    %583 = vmatprep.subr.mxu0 0.0
    %584 = vmatpush2.msra.mxu0 0.0
    %585 = vmatprep.subr.mxu0 0.0
    %586 = vmatpush2.msra.mxu0 0.0
    %587 = vmatprep.mubr.f32.mxu0 0.0
    %588 = vmatmul.mubr.f32.gmra.mxu0 %v521
    %v589 = vpop.f32.mrf.mxu0
    %v590 = vadd.f32 0.0, %v589
    %v591 = vpop.f32.mrf.mxu0
    %592 = vdwg.mxu0
    %v594 = vsel %vm519, %v283, 0
    %596 = vmatprep.subr.mxu0 0.0
    %597 = vmatpush1.msra.mxu0 0.0
    %598 = vmatprep.subr.mxu0 0.0
    %599 = vmatpush1.msra.mxu0 0.0
    %600 = vmatprep.subr.mxu0 0.0
    %601 = vmatpush1.msra.mxu0 0.0
    %602 = vmatprep.subr.mxu0 0.0
    %603 = vmatpush1.msra.mxu0 0.0
    %604 = vmatprep.subr.mxu0 0.0
    %605 = vmatpush1.msra.mxu0 0.0
    %606 = vmatprep.subr.mxu0 0.0
    %607 = vmatpush1.msra.mxu0 0.0
    %608 = vmatprep.subr.mxu0 0.0
    %609 = vmatpush1.msra.mxu0 0.0
    %610 = vmatprep.subr.mxu0 0.0
    %611 = vmatpush1.msra.mxu0 0.0
    %612 = vmatprep.subr.mxu0 0.0
    %613 = vmatpush1.msra.mxu0 0.0
    %614 = vmatprep.subr.mxu0 0.0
    %615 = vmatpush1.msra.mxu0 0.0
    %616 = vmatprep.subr.mxu0 0.0
    %617 = vmatpush1.msra.mxu0 0.0
    %618 = vmatprep.subr.mxu0 0.0
    %619 = vmatpush1.msra.mxu0 0.0
    %620 = vmatprep.subr.mxu0 0.0
    %621 = vmatpush1.msra.mxu0 0.0
    %622 = vmatprep.subr.mxu0 0.0
    %623 = vmatpush1.msra.mxu0 0.0
    %624 = vmatprep.subr.mxu0 0.0
    %625 = vmatpush1.msra.mxu0 %v516
    %626 = vmatprep.subr.mxu0 0.0
    %627 = vmatpush1.msra.mxu0 %v515
    %628 = vmatprep.subr.mxu0 0.0
    %629 = vmatpush2.msra.mxu0 0.0
    %630 = vmatprep.subr.mxu0 0.0
    %631 = vmatpush2.msra.mxu0 0.0
    %632 = vmatprep.subr.mxu0 0.0
    %633 = vmatpush2.msra.mxu0 0.0
    %634 = vmatprep.subr.mxu0 0.0
    %635 = vmatpush2.msra.mxu0 0.0
    %636 = vmatprep.subr.mxu0 0.0
    %637 = vmatpush2.msra.mxu0 0.0
    %638 = vmatprep.subr.mxu0 0.0
    %639 = vmatpush2.msra.mxu0 0.0
    %640 = vmatprep.subr.mxu0 0.0
    %641 = vmatpush2.msra.mxu0 0.0
    %642 = vmatprep.subr.mxu0 0.0
    %643 = vmatpush2.msra.mxu0 0.0
    %644 = vmatprep.subr.mxu0 0.0
    %645 = vmatpush2.msra.mxu0 0.0
    %646 = vmatprep.subr.mxu0 0.0
    %647 = vmatpush2.msra.mxu0 0.0
    %648 = vmatprep.subr.mxu0 0.0
    %649 = vmatpush2.msra.mxu0 0.0
    %650 = vmatprep.subr.mxu0 0.0
    %651 = vmatpush2.msra.mxu0 0.0
    %652 = vmatprep.subr.mxu0 0.0
    %653 = vmatpush2.msra.mxu0 0.0
    %654 = vmatprep.subr.mxu0 0.0
    %655 = vmatpush2.msra.mxu0 0.0
    %656 = vmatprep.subr.mxu0 0.0
    %657 = vmatpush2.msra.mxu0 0.0
    %658 = vmatprep.subr.mxu0 0.0
    %659 = vmatpush2.msra.mxu0 0.0
    %660 = vmatprep.mubr.f32.mxu0 0.0
    %661 = vmatmul.mubr.f32.gmra.mxu0 %v594
    %v662 = vpop.f32.mrf.mxu0
    %v663 = vadd.f32 %v590, %v662
    %v664 = vpop.f32.mrf.mxu0
    %665 = vdwg.mxu0
    %v666 = vxor.u32 %v663, 2147483648
    %v667 = vmul.f32 %v666, 1.442695
    %v668 = vpow.pop %v667
    %v669 = vadd.f32 %v668, 1.0
    %v670 = vrcp.pop %v669
    %v671 = vmul.f32 1.0, %v670
    %v672 = vld [vmem:[%s7] sm:$0xff]
    %v673 = vld [vmem:[%s7 + $0x8] sm:$0xff]
    %v674 = vld [vmem:[%s8] sm:$0xff]
    %v675 = vld [vmem:[%s8 + $0x8] sm:$0xff]
    %v677 = vsel %vm519, %v514, 0
    %679 = vmatprep.subr.mxu0 0.0
    %680 = vmatpush1.msra.mxu0 0.0
    %681 = vmatprep.subr.mxu0 0.0
    %682 = vmatpush1.msra.mxu0 0.0
    %683 = vmatprep.subr.mxu0 0.0
    %684 = vmatpush1.msra.mxu0 0.0
    %685 = vmatprep.subr.mxu0 0.0
    %686 = vmatpush1.msra.mxu0 0.0
    %687 = vmatprep.subr.mxu0 0.0
    %688 = vmatpush1.msra.mxu0 0.0
    %689 = vmatprep.subr.mxu0 0.0
    %690 = vmatpush1.msra.mxu0 0.0
    %691 = vmatprep.subr.mxu0 0.0
    %692 = vmatpush1.msra.mxu0 0.0
    %693 = vmatprep.subr.mxu0 0.0
    %694 = vmatpush1.msra.mxu0 0.0
    %695 = vmatprep.subr.mxu0 0.0
    %696 = vmatpush1.msra.mxu0 0.0
    %697 = vmatprep.subr.mxu0 0.0
    %698 = vmatpush1.msra.mxu0 0.0
    %699 = vmatprep.subr.mxu0 0.0
    %700 = vmatpush1.msra.mxu0 0.0
    %701 = vmatprep.subr.mxu0 0.0
    %702 = vmatpush1.msra.mxu0 0.0
    %703 = vmatprep.subr.mxu0 0.0
    %704 = vmatpush1.msra.mxu0 0.0
    %705 = vmatprep.subr.mxu0 0.0
    %706 = vmatpush1.msra.mxu0 0.0
    %707 = vmatprep.subr.mxu0 0.0
    %708 = vmatpush1.msra.mxu0 %v675
    %709 = vmatprep.subr.mxu0 0.0
    %710 = vmatpush1.msra.mxu0 %v674
    %711 = vmatprep.subr.mxu0 0.0
    %712 = vmatpush2.msra.mxu0 0.0
    %713 = vmatprep.subr.mxu0 0.0
    %714 = vmatpush2.msra.mxu0 0.0
    %715 = vmatprep.subr.mxu0 0.0
    %716 = vmatpush2.msra.mxu0 0.0
    %717 = vmatprep.subr.mxu0 0.0
    %718 = vmatpush2.msra.mxu0 0.0
    %719 = vmatprep.subr.mxu0 0.0
    %720 = vmatpush2.msra.mxu0 0.0
    %721 = vmatprep.subr.mxu0 0.0
    %722 = vmatpush2.msra.mxu0 0.0
    %723 = vmatprep.subr.mxu0 0.0
    %724 = vmatpush2.msra.mxu0 0.0
    %725 = vmatprep.subr.mxu0 0.0
    %726 = vmatpush2.msra.mxu0 0.0
    %727 = vmatprep.subr.mxu0 0.0
    %728 = vmatpush2.msra.mxu0 0.0
    %729 = vmatprep.subr.mxu0 0.0
    %730 = vmatpush2.msra.mxu0 0.0
    %731 = vmatprep.subr.mxu0 0.0
    %732 = vmatpush2.msra.mxu0 0.0
    %733 = vmatprep.subr.mxu0 0.0
    %734 = vmatpush2.msra.mxu0 0.0
    %735 = vmatprep.subr.mxu0 0.0
    %736 = vmatpush2.msra.mxu0 0.0
    %737 = vmatprep.subr.mxu0 0.0
    %738 = vmatpush2.msra.mxu0 0.0
    %739 = vmatprep.subr.mxu0 0.0
    %740 = vmatpush2.msra.mxu0 0.0
    %741 = vmatprep.subr.mxu0 0.0
    %742 = vmatpush2.msra.mxu0 0.0
    %743 = vmatprep.mubr.f32.mxu0 0.0
    %744 = vmatmul.mubr.f32.gmra.mxu0 %v677
    %v745 = vpop.f32.mrf.mxu0
    %v746 = vadd.f32 0.0, %v745
    %v747 = vpop.f32.mrf.mxu0
    %748 = vdwg.mxu0
    %v750 = vsel %vm519, %v284, 0
    %752 = vmatprep.subr.mxu0 0.0
    %753 = vmatpush1.msra.mxu0 0.0
    %754 = vmatprep.subr.mxu0 0.0
    %755 = vmatpush1.msra.mxu0 0.0
    %756 = vmatprep.subr.mxu0 0.0
    %757 = vmatpush1.msra.mxu0 0.0
    %758 = vmatprep.subr.mxu0 0.0
    %759 = vmatpush1.msra.mxu0 0.0
    %760 = vmatprep.subr.mxu0 0.0
    %761 = vmatpush1.msra.mxu0 0.0
    %762 = vmatprep.subr.mxu0 0.0
    %763 = vmatpush1.msra.mxu0 0.0
    %764 = vmatprep.subr.mxu0 0.0
    %765 = vmatpush1.msra.mxu0 0.0
    %766 = vmatprep.subr.mxu0 0.0
    %767 = vmatpush1.msra.mxu0 0.0
    %768 = vmatprep.subr.mxu0 0.0
    %769 = vmatpush1.msra.mxu0 0.0
    %770 = vmatprep.subr.mxu0 0.0
    %771 = vmatpush1.msra.mxu0 0.0
    %772 = vmatprep.subr.mxu0 0.0
    %773 = vmatpush1.msra.mxu0 0.0
    %774 = vmatprep.subr.mxu0 0.0
    %775 = vmatpush1.msra.mxu0 0.0
    %776 = vmatprep.subr.mxu0 0.0
    %777 = vmatpush1.msra.mxu0 0.0
    %778 = vmatprep.subr.mxu0 0.0
    %779 = vmatpush1.msra.mxu0 0.0
    %780 = vmatprep.subr.mxu0 0.0
    %781 = vmatpush1.msra.mxu0 %v673
    %782 = vmatprep.subr.mxu0 0.0
    %783 = vmatpush1.msra.mxu0 %v672
    %784 = vmatprep.subr.mxu0 0.0
    %785 = vmatpush2.msra.mxu0 0.0
    %786 = vmatprep.subr.mxu0 0.0
    %787 = vmatpush2.msra.mxu0 0.0
    %788 = vmatprep.subr.mxu0 0.0
    %789 = vmatpush2.msra.mxu0 0.0
    %790 = vmatprep.subr.mxu0 0.0
    %791 = vmatpush2.msra.mxu0 0.0
    %792 = vmatprep.subr.mxu0 0.0
    %793 = vmatpush2.msra.mxu0 0.0
    %794 = vmatprep.subr.mxu0 0.0
    %795 = vmatpush2.msra.mxu0 0.0
    %796 = vmatprep.subr.mxu0 0.0
    %797 = vmatpush2.msra.mxu0 0.0
    %798 = vmatprep.subr.mxu0 0.0
    %799 = vmatpush2.msra.mxu0 0.0
    %800 = vmatprep.subr.mxu0 0.0
    %801 = vmatpush2.msra.mxu0 0.0
    %802 = vmatprep.subr.mxu0 0.0
    %803 = vmatpush2.msra.mxu0 0.0
    %804 = vmatprep.subr.mxu0 0.0
    %805 = vmatpush2.msra.mxu0 0.0
    %806 = vmatprep.subr.mxu0 0.0
    %807 = vmatpush2.msra.mxu0 0.0
    %808 = vmatprep.subr.mxu0 0.0
    %809 = vmatpush2.msra.mxu0 0.0
    %810 = vmatprep.subr.mxu0 0.0
    %811 = vmatpush2.msra.mxu0 0.0
    %812 = vmatprep.subr.mxu0 0.0
    %813 = vmatpush2.msra.mxu0 0.0
    %814 = vmatprep.subr.mxu0 0.0
    %815 = vmatpush2.msra.mxu0 0.0
    %816 = vmatprep.mubr.f32.mxu0 0.0
    %817 = vmatmul.mubr.f32.gmra.mxu0 %v750
    %v818 = vpop.f32.mrf.mxu0
    %v819 = vadd.f32 %v746, %v818
    %v820 = vpop.f32.mrf.mxu0
    %821 = vdwg.mxu0
    %v822 = vxor.u32 %v819, 2147483648
    %v823 = vmul.f32 %v822, 1.442695
    %v824 = vpow.pop %v823
    %v825 = vadd.f32 %v824, 1.0
    %v826 = vrcp.pop %v825
    %v827 = vmul.f32 1.0, %v826
    %v828 = vld [vmem:[%s3] sm:$0xff]
    %v829 = vld [vmem:[%s3 + $0x8] sm:$0xff]
    %v830 = vld [vmem:[%s3 + $0x10] sm:$0xff]
    %v831 = vld [vmem:[%s3 + $0x18] sm:$0xff]
    %v832 = vld [vmem:[%s4] sm:$0xff]
    %v833 = vld [vmem:[%s4 + $0x8] sm:$0xff]
    %v834 = vld [vmem:[%s4 + $0x10] sm:$0xff]
    %v835 = vld [vmem:[%s4 + $0x18] sm:$0xff]
    %v837 = vsel %vm519, %v827, 0
    %839 = vmatprep.subr.mxu0 0.0
    %840 = vmatpush1.msra.mxu0 0.0
    %841 = vmatprep.subr.mxu0 0.0
    %842 = vmatpush1.msra.mxu0 0.0
    %843 = vmatprep.subr.mxu0 0.0
    %844 = vmatpush1.msra.mxu0 0.0
    %845 = vmatprep.subr.mxu0 0.0
    %846 = vmatpush1.msra.mxu0 0.0
    %847 = vmatprep.subr.mxu0 0.0
    %848 = vmatpush1.msra.mxu0 0.0
    %849 = vmatprep.subr.mxu0 0.0
    %850 = vmatpush1.msra.mxu0 0.0
    %851 = vmatprep.subr.mxu0 0.0
    %852 = vmatpush1.msra.mxu0 0.0
    %853 = vmatprep.subr.mxu0 0.0
    %854 = vmatpush1.msra.mxu0 0.0
    %855 = vmatprep.subr.mxu0 0.0
    %856 = vmatpush1.msra.mxu0 0.0
    %857 = vmatprep.subr.mxu0 0.0
    %858 = vmatpush1.msra.mxu0 0.0
    %859 = vmatprep.subr.mxu0 0.0
    %860 = vmatpush1.msra.mxu0 0.0
    %861 = vmatprep.subr.mxu0 0.0
    %862 = vmatpush1.msra.mxu0 0.0
    %863 = vmatprep.subr.mxu0 0.0
    %864 = vmatpush1.msra.mxu0 0.0
    %865 = vmatprep.subr.mxu0 0.0
    %866 = vmatpush1.msra.mxu0 0.0
    %867 = vmatprep.subr.mxu0 %v835
    %868 = vmatpush1.msra.mxu0 %v834
    %869 = vmatprep.subr.mxu0 %v833
    %870 = vmatpush1.msra.mxu0 %v832
    %871 = vmatprep.subr.mxu0 0.0
    %872 = vmatpush2.msra.mxu0 0.0
    %873 = vmatprep.subr.mxu0 0.0
    %874 = vmatpush2.msra.mxu0 0.0
    %875 = vmatprep.subr.mxu0 0.0
    %876 = vmatpush2.msra.mxu0 0.0
    %877 = vmatprep.subr.mxu0 0.0
    %878 = vmatpush2.msra.mxu0 0.0
    %879 = vmatprep.subr.mxu0 0.0
    %880 = vmatpush2.msra.mxu0 0.0
    %881 = vmatprep.subr.mxu0 0.0
    %882 = vmatpush2.msra.mxu0 0.0
    %883 = vmatprep.subr.mxu0 0.0
    %884 = vmatpush2.msra.mxu0 0.0
    %885 = vmatprep.subr.mxu0 0.0
    %886 = vmatpush2.msra.mxu0 0.0
    %887 = vmatprep.subr.mxu0 0.0
    %888 = vmatpush2.msra.mxu0 0.0
    %889 = vmatprep.subr.mxu0 0.0
    %890 = vmatpush2.msra.mxu0 0.0
    %891 = vmatprep.subr.mxu0 0.0
    %892 = vmatpush2.msra.mxu0 0.0
    %893 = vmatprep.subr.mxu0 0.0
    %894 = vmatpush2.msra.mxu0 0.0
    %895 = vmatprep.subr.mxu0 0.0
    %896 = vmatpush2.msra.mxu0 0.0
    %897 = vmatprep.subr.mxu0 0.0
    %898 = vmatpush2.msra.mxu0 0.0
    %899 = vmatprep.subr.mxu0 0.0
    %900 = vmatpush2.msra.mxu0 0.0
    %901 = vmatprep.subr.mxu0 0.0
    %902 = vmatpush2.msra.mxu0 0.0
    %903 = vmatprep.mubr.f32.mxu0 0.0
    %904 = vmatmul.mubr.f32.gmra.mxu0 %v837
    %v905 = vpop.f32.mrf.mxu0
    %v906 = vadd.f32 0.0, %v905
    %v907 = vpop.f32.mrf.mxu0
    %v908 = vadd.f32 0.0, %v907
    %909 = vdwg.mxu0
    %v911 = vsel %vm519, %v671, 0
    %913 = vmatprep.subr.mxu0 0.0
    %914 = vmatpush1.msra.mxu0 0.0
    %915 = vmatprep.subr.mxu0 0.0
    %916 = vmatpush1.msra.mxu0 0.0
    %917 = vmatprep.subr.mxu0 0.0
    %918 = vmatpush1.msra.mxu0 0.0
    %919 = vmatprep.subr.mxu0 0.0
    %920 = vmatpush1.msra.mxu0 0.0
    %921 = vmatprep.subr.mxu0 0.0
    %922 = vmatpush1.msra.mxu0 0.0
    %923 = vmatprep.subr.mxu0 0.0
    %924 = vmatpush1.msra.mxu0 0.0
    %925 = vmatprep.subr.mxu0 0.0
    %926 = vmatpush1.msra.mxu0 0.0
    %927 = vmatprep.subr.mxu0 0.0
    %928 = vmatpush1.msra.mxu0 0.0
    %929 = vmatprep.subr.mxu0 0.0
    %930 = vmatpush1.msra.mxu0 0.0
    %931 = vmatprep.subr.mxu0 0.0
    %932 = vmatpush1.msra.mxu0 0.0
    %933 = vmatprep.subr.mxu0 0.0
    %934 = vmatpush1.msra.mxu0 0.0
    %935 = vmatprep.subr.mxu0 0.0
    %936 = vmatpush1.msra.mxu0 0.0
    %937 = vmatprep.subr.mxu0 0.0
    %938 = vmatpush1.msra.mxu0 0.0
    %939 = vmatprep.subr.mxu0 0.0
    %940 = vmatpush1.msra.mxu0 0.0
    %941 = vmatprep.subr.mxu0 %v831
    %942 = vmatpush1.msra.mxu0 %v830
    %943 = vmatprep.subr.mxu0 %v829
    %944 = vmatpush1.msra.mxu0 %v828
    %945 = vmatprep.subr.mxu0 0.0
    %946 = vmatpush2.msra.mxu0 0.0
    %947 = vmatprep.subr.mxu0 0.0
    %948 = vmatpush2.msra.mxu0 0.0
    %949 = vmatprep.subr.mxu0 0.0
    %950 = vmatpush2.msra.mxu0 0.0
    %951 = vmatprep.subr.mxu0 0.0
    %952 = vmatpush2.msra.mxu0 0.0
    %953 = vmatprep.subr.mxu0 0.0
    %954 = vmatpush2.msra.mxu0 0.0
    %955 = vmatprep.subr.mxu0 0.0
    %956 = vmatpush2.msra.mxu0 0.0
    %957 = vmatprep.subr.mxu0 0.0
    %958 = vmatpush2.msra.mxu0 0.0
    %959 = vmatprep.subr.mxu0 0.0
    %960 = vmatpush2.msra.mxu0 0.0
    %961 = vmatprep.subr.mxu0 0.0
    %962 = vmatpush2.msra.mxu0 0.0
    %963 = vmatprep.subr.mxu0 0.0
    %964 = vmatpush2.msra.mxu0 0.0
    %965 = vmatprep.subr.mxu0 0.0
    %966 = vmatpush2.msra.mxu0 0.0
    %967 = vmatprep.subr.mxu0 0.0
    %968 = vmatpush2.msra.mxu0 0.0
    %969 = vmatprep.subr.mxu0 0.0
    %970 = vmatpush2.msra.mxu0 0.0
    %971 = vmatprep.subr.mxu0 0.0
    %972 = vmatpush2.msra.mxu0 0.0
    %973 = vmatprep.subr.mxu0 0.0
    %974 = vmatpush2.msra.mxu0 0.0
    %975 = vmatprep.subr.mxu0 0.0
    %976 = vmatpush2.msra.mxu0 0.0
    %977 = vmatprep.mubr.f32.mxu0 0.0
    %978 = vmatmul.mubr.f32.gmra.mxu0 %v911
    %v979 = vpop.f32.mrf.mxu0
    %v980 = vadd.f32 %v906, %v979
    %v981 = vpop.f32.mrf.mxu0
    %v982 = vadd.f32 %v908, %v981
    %983 = vdwg.mxu0
    %v984 = vmul.f32 %v980, 0.5
    %v985 = vmul.f32 %v982, 0.5
    %v988 = vcombine.low %v984, %v985
    %v990 = vunpack.c.l.s4 1966171168
    %v991 = vunpack.c.0.s8 %v990
    %v992 = vlaneseq
    %v993 = vshrl.u32 %v992, 7
    %v994 = vsub.s32 %v991, %v993
    %v995 = vrot.slane %v988, %v994
    %v996 = vcombine.high %v995, %v995
    %v998 = vunpack.c.l.s4 1966171168
    %v999 = vunpack.c.0.s8 %v998
    %v1000 = vlaneseq
    %v1001 = vshrl.u32 %v1000, 7
    %v1002 = vsub.s32 %v999, %v1001
    %v1003 = vrot.slane %v995, %v1002
    %v1005 = vunpack.c.l.s4 1966171168
    %v1006 = vunpack.c.0.s8 %v1005
    %v1007 = vlaneseq
    %v1008 = vshrl.u32 %v1007, 7
    %v1009 = vsub.s32 %v1006, %v1008
    %v1010 = vrot.slane %v996, %v1009
    %v1011 = vlaneseq
    %v1012 = vshrl.u32 %v1011, 7
    %v1013 = vsub.s32 0, %v1012
    %v1014 = vrot.slane %v1003, %v1013
    %v1015 = vlaneseq
    %v1016 = vshrl.u32 %v1015, 7
    %v1017 = vsub.s32 1, %v1016
    %v1018 = vrot.slane %v1003, %v1017
    %v1019 = vlaneseq
    %v1020 = vshrl.u32 %v1019, 7
    %v1021 = vsub.s32 0, %v1020
    %v1022 = vrot.slane %v1010, %v1021
    %v1023 = vlaneseq
    %v1024 = vshrl.u32 %v1023, 7
    %v1025 = vsub.s32 1, %v1024
    %v1026 = vrot.slane %v1010, %v1025
    %v1027 = vcombine.low %v1014, %v1018
    %v1028 = vcombine.low %v1022, %v1026
    %v1031 = vmul.f32 %v33, %v1027
    %v1032 = vmul.f32 %v34, %v1028
    %1033 = vst [vmem:[#allocation2] sm:$0xff] %v1031
    %1034 = vst [vmem:[#allocation2 + $0x8] sm:$0xff] %v1032
    // Predicated region
    $region38: #{tpu_custom_call.1} parent=1 // pred_check
      _
    $region39: #{tpu_custom_call.1} parent=1 // pred_check_branch
      %1036 = sbr.rel (0) target = $region41
    $region40: #{tpu_custom_call.1} parent=1 // pred_region
      %s1038 = ssub.s32 256, 256
      %1039 = vsyncadd [#allocation3], %s1038
      %s1040 = sshll.u32 [#allocation2], 4
      %s1041 = int_to_ptr.vmem [resolvable:$true] %s1040
      %1046 = dma.vmem_to_hbm [thread:$0]  %s1041, 256, %s9, [#allocation3], 128, 128, 8
    $region41: #{tpu_custom_call.1} parent=1 // pred_fallthru
      _
    // Predicated region
    $region42: #{tpu_custom_call.1} parent=1 // pred_check
      _
    $region43: #{tpu_custom_call.1} parent=1 // pred_check_branch
      %1048 = sbr.rel (0) target = $region45
    $region44: #{tpu_custom_call.1} parent=1 // pred_region
      %1049 = dma.done [#allocation3], 256
    $region45: #{tpu_custom_call.1} parent=1 // pred_fallthru
      _
    %1050 = vsyncpa [#allocation3], 1

</llo_original>
